<compile_context>
chip_gen: v5e
topology: v5e:2x2
jax: 0.10.0
libtpu: 0.0.40
codegen_flags: <defaults>
</compile_context>

<pallas_src>
import functools

import jax
import jax.numpy as jnp
from jax import lax
from jax.experimental import pallas as pl
from jax.experimental.pallas import tpu as pltpu


# ----------------------------- kernel ----------------------------------------


def _strip_kernel(x_ref, *refs, ops, two_strips, axis, strip_len):
    """Update boundary rows/cols inside one boundary strip.

    Block shapes: rows -> (tb, tc, strip_len, W); cols -> (tb, tc, H, strip_len).
    refs = (*value_refs, o_ref).  `ops` is a static tuple of
    (step_idx, dst, src_or_None) aligned with value_refs, in the caller's dict
    order; dst/src are local indices along `axis` within the strip.  The strip
    is read once, all sides are applied on the value with small positional
    masks, and the strip is stored once.
    """
    o_ref = refs[-1]
    v_refs = refs[:-1]

    y = x_ref[...]

    # Positional iota with unit leading dims (tb*tc times smaller than a
    # full-block iota); last two dims match the strip so the select needs no
    # mask relayout.
    if axis == 2:
        pos = lax.broadcasted_iota(jnp.int32, (1, 1, strip_len, x_ref.shape[3]), 2)
    else:
        pos = lax.broadcasted_iota(jnp.int32, (1, 1, x_ref.shape[2], strip_len), 3)

    s = pl.program_id(2)

    for (step_idx, dst, src), v_ref in zip(ops, v_refs):
        val = v_ref[...]
        if src is not None:
            # Neumann: neighbour row/col is always inside this strip.  Read it
            # from the running value `y` so sequential in-place semantics hold
            # even for degenerate H==2 / W==2 grids.
            if axis == 2:
                val = y[:, :, src:src + 1, :] + val
            else:
                val = y[:, :, :, src:src + 1] + val
        mask = pos == dst
        if two_strips:
            # This op belongs to exactly one of the two strips visited by the
            # grid; gate it with the scalar strip-step index.
            mask = jnp.logical_and(mask, s == step_idx)
        y = jnp.where(mask, val, y)

    o_ref[...] = y


# ----------------------------- pass builder ----------------------------------


def _leading_blocks(B, C, unit_bytes, target_bytes=2 << 20, max_slabs=128):
    """Pick (tb, tc) dividing (B, C) maximizing block size under the target."""
    best, best_sz = (1, 1), 0
    for tb in range(1, B + 1):
        if B % tb:
            continue
        for tc in range(1, C + 1):
            if C % tc:
                continue
            slabs = tb * tc
            sz = slabs * unit_bytes
            if slabs <= max_slabs and sz <= target_bytes and sz > best_sz:
                best, best_sz = (tb, tc), sz
    return best


def _strip_pass(x, sides_vals, *, axis, neumann):
    """One pallas_call touching only the boundary strips along `axis`.

    axis == 2: row sides ('north'/'south'), values shaped (B, C, 1, W).
    axis == 3: col sides ('west'/'east'),  values shaped (B, C, H, 1).
    The output HBM buffer is aliased to x, so the interior never leaves HBM.
    """
    B, C, H, W = x.shape
    itemsize = x.dtype.itemsize
    extent = H if axis == 2 else W
    granule = 8 if axis == 2 else 128
    sl = granule if (extent % granule == 0 and extent >= granule) else extent
    n_blocks = extent // sl
    lo_side = "north" if axis == 2 else "west"

    def side_block(side):
        return 0 if side == lo_side else n_blocks - 1

    strip_blocks = []
    for side, _ in sides_vals:
        b = side_block(side)
        if b not in strip_blocks:
            strip_blocks.append(b)
    strip_blocks.sort()
    n_strips = len(strip_blocks)
    strip0 = strip_blocks[0]
    stride = strip_blocks[1] - strip_blocks[0] if n_strips == 2 else 0

    ops = []
    for side, _ in sides_vals:
        step_idx = strip_blocks.index(side_block(side))
        if side == lo_side:
            dst, src = 0, 1
        else:
            dst, src = sl - 1, sl - 2
        ops.append((step_idx, dst, src if neumann else None))

    unit = (sl * W if axis == 2 else H * sl) * itemsize
    tb, tc = _leading_blocks(B, C, unit)
    grid = (B // tb, C // tc, n_strips)

    if axis == 2:
        x_block = (tb, tc, sl, W)
        v_block = (tb, tc, 1, W)
        x_map = lambda ib, ic, s: (ib, ic, strip0 + s * stride, 0)
    else:
        x_block = (tb, tc, H, sl)
        v_block = (tb, tc, H, 1)
        x_map = lambda ib, ic, s: (ib, ic, 0, strip0 + s * stride)
    v_map = lambda ib, ic, s: (ib, ic, 0, 0)

    vals = [v for _, v in sides_vals]
    block_bytes = tb * tc * unit
    strip_bytes = n_strips * B * C * unit

    kernel = functools.partial(
        _strip_kernel, ops=tuple(ops), two_strips=(n_strips == 2),
        axis=axis, strip_len=sl)

    cost = pl.CostEstimate(
        flops=n_strips * B * C * (sl * W if axis == 2 else H * sl),
        transcendentals=0,
        bytes_accessed=2 * strip_bytes + sum(int(v.size) * itemsize for v in vals),
    )

    return pl.pallas_call(
        kernel,
        out_shape=jax.ShapeDtypeStruct(x.shape, x.dtype),
        grid=grid,
        in_specs=[pl.BlockSpec(x_block, x_map)]
                 + [pl.BlockSpec(v_block, v_map) for _ in vals],
        out_specs=pl.BlockSpec(x_block, x_map),
        # Output buffer == input buffer: interior stays in HBM untouched.
        input_output_aliases={0: 0},
        compiler_params=pltpu.CompilerParams(
            dimension_semantics=("parallel", "parallel", "parallel"),
            vmem_limit_bytes=int(max(32 << 20, min(64 << 20, 6 * block_bytes))),
        ),
        cost_estimate=cost,
    )(x, *vals)


# ----------------------------- wrapper ---------------------------------------


def apply_boundary_conditions(x, boundaries):
    """Pallas equivalent of BoundaryConditionHandler.forward.

    Args:
      x: [B, C, H, W] float array.  NOTE: like the torch module this is an
        in-place update — x's buffer is donated to the result.  Pass
        jnp.copy(x) if you still need x afterwards.
      boundaries: None, or dict with 'type' in {'dirichlet','neumann','periodic'}:
        - dirichlet/neumann: optional 'north'/'south' values broadcastable to
          [B, C, W], 'east'/'west' values broadcastable to [B, C, H]
          (applied in dict order, like the module)
        - periodic: optional python bools 'periodic_y', 'periodic_x'
    """
    if boundaries is None:
        return x

    x = jnp.asarray(x)
    B, C, H, W = x.shape
    btype = boundaries.get("type", "dirichlet")

    if btype in ("dirichlet", "neumann"):
        neumann = btype == "neumann"
        items = [(k, v) for k, v in boundaries.items()
                 if k in ("north", "south", "east", "west") and v is not None]
        if not items:
            return x
        # Group consecutive same-orientation sides; each group is one strip
        # pass on the aliased buffer, so dict-order semantics (corners,
        # Neumann neighbours) are reproduced exactly.
        groups = []
        for name, v in items:
            axis = 2 if name in ("north", "south") else 3
            if groups and groups[-1][0] == axis:
                groups[-1][1].append((name, v))
            else:
                groups.append((axis, [(name, v)]))
        y = x
        for axis, sides in groups:
            prepped = []
            for name, v in sides:
                if axis == 2:
                    arr = jnp.broadcast_to(jnp.asarray(v, dtype=x.dtype),
                                           (B, C, W)).reshape(B, C, 1, W)
                else:
                    arr = jnp.broadcast_to(jnp.asarray(v, dtype=x.dtype),
                                           (B, C, H)).reshape(B, C, H, 1)
                prepped.append((name, arr))
            y = _strip_pass(y, prepped, axis=axis, neumann=neumann)
        return y

    if btype == "periodic":
        y = x
        if bool(boundaries.get("periodic_y", False)):
            # row 0 <- row H-2, row H-1 <- row 1; sources are never
            # destinations, so slicing the pre-pass state is exact.
            nv = y[:, :, H - 2, :].reshape(B, C, 1, W)
            sv = y[:, :, 1, :].reshape(B, C, 1, W)
            y = _strip_pass(y, [("north", nv), ("south", sv)],
                            axis=2, neumann=False)
        if bool(boundaries.get("periodic_x", False)):
            # Sliced AFTER the row pass so corners see the periodic_y update,
            # exactly as in the reference.
            wv = y[:, :, :, W - 2].reshape(B, C, H, 1)
            ev = y[:, :, :, 1].reshape(B, C, H, 1)
            y = _strip_pass(y, [("west", wv), ("east", ev)],
                            axis=3, neumann=False)
        return y

    # Unknown type: reference module returns x unchanged.
    return x


# ----------------------------- reference (plain JAX) --------------------------


def _reference(x, boundaries):
    if boundaries is None:
        return x
    x = jnp.asarray(x)
    btype = boundaries.get("type", "dirichlet")
    if btype in ("dirichlet", "neumann"):
        for d, v in boundaries.items():
            if d == "type" or v is None:
                continue
            if btype == "dirichlet":
                if d == "north":
                    x = x.at[:, :, 0, :].set(v)
                elif d == "south":
                    x = x.at[:, :, -1, :].set(v)
                elif d == "east":
                    x = x.at[:, :, :, -1].set(v)
                elif d == "west":
                    x = x.at[:, :, :, 0].set(v)
            else:
                if d == "north":
                    x = x.at[:, :, 0, :].set(x[:, :, 1, :] + v)
                elif d == "south":
                    x = x.at[:, :, -1, :].set(x[:, :, -2, :] + v)
                elif d == "east":
                    x = x.at[:, :, :, -1].set(x[:, :, :, -2] + v)
                elif d == "west":
                    x = x.at[:, :, :, 0].set(x[:, :, :, 1] + v)
    elif btype == "periodic":
        if boundaries.get("periodic_y", False):
            x = x.at[:, :, 0, :].set(x[:, :, -2, :])
            x = x.at[:, :, -1, :].set(x[:, :, 1, :])
        if boundaries.get("periodic_x", False):
            x = x.at[:, :, :, 0].set(x[:, :, :, -2])
            x = x.at[:, :, :, -1].set(x[:, :, :, 1])
    return x


# ----------------------------- main -------------------------------------------


if __name__ == "__main__":
    B, C, H, W = 2, 4, 16, 16
    key = jax.random.PRNGKey(0)
    k0, k1, k2, k3, k4 = jax.random.split(key, 5)

    x = jax.random.normal(k0, (B, C, H, W), dtype=jnp.float32)
    north = jax.random.normal(k1, (B, C, W), dtype=jnp.float32)
    south = jax.random.normal(k2, (B, C, W), dtype=jnp.float32)
    east = jax.random.normal(k3, (B, C, H), dtype=jnp.float32)
    west = jax.random.normal(k4, (B, C, H), dtype=jnp.float32)

    cases = [
        {"type": "dirichlet", "north": north, "south": south,
         "east": east, "west": west},
        # partial + scrambled dict order (north must win the shared corner)
        {"type": "dirichlet", "east": east, "north": north},
        {"type": "neumann", "north": north, "south": south,
         "east": east, "west": west},
        # order-sensitive Neumann corners: east before north before west
        {"type": "neumann", "east": east, "north": north, "west": west},
        {"type": "periodic", "periodic_y": True, "periodic_x": True},
        {"type": "periodic", "periodic_x": True},
    ]

    for bc in cases:
        # The kernel donates its input (in-place semantics like the torch
        # module), so hand it a fresh copy and keep `x` for the reference.
        out = jax.block_until_ready(apply_boundary_conditions(jnp.copy(x), bc))
        ref = _reference(x, bc)
        assert out.shape == x.shape and out.dtype == x.dtype
        assert jnp.allclose(out, ref, atol=1e-6), f"mismatch for {bc.get('type')}"

    # Larger grid: exercises two 8-row strips AND two 128-lane column strips
    # (west/east grouped into one two-strip column pass).
    B2, C2, H2, W2 = 1, 3, 256, 256
    kk = jax.random.split(jax.random.PRNGKey(1), 5)
    x2 = jax.random.normal(kk[0], (B2, C2, H2, W2), dtype=jnp.float32)
    bc2 = {"type": "neumann",
           "north": jax.random.normal(kk[1], (B2, C2, W2), dtype=jnp.float32),
           "west": jax.random.normal(kk[2], (B2, C2, H2), dtype=jnp.float32),
           "east": jax.random.normal(kk[3], (B2, C2, H2), dtype=jnp.float32),
           "south": jax.random.normal(kk[4], (B2, C2, W2), dtype=jnp.float32)}
    out2 = jax.block_until_ready(apply_boundary_conditions(jnp.copy(x2), bc2))
    assert jnp.allclose(out2, _reference(x2, bc2), atol=1e-6), "mismatch for 256x256 neumann"

    # boundaries=None passthrough
    assert jnp.array_equal(apply_boundary_conditions(x, None), x)

    print("KERNEL_OK")
</pallas_src>

<mosaic_0001>
module attributes {stable_mosaic.version = 11 : i64} {
  func.func @_strip_kernel(%arg0: i32, %arg1: i32, %arg2: i32, %arg3: memref<2x4x8x16xf32, #tpu.memory_space<vmem>>, %arg4: memref<2x4x1x16xf32, #tpu.memory_space<vmem>>, %arg5: memref<2x4x1x16xf32, #tpu.memory_space<vmem>>, %arg6: memref<2x4x8x16xf32, #tpu.memory_space<vmem>>) attributes {dimension_semantics = [#tpu.dimension_semantics<parallel>, #tpu.dimension_semantics<parallel>, #tpu.dimension_semantics<parallel>], iteration_bounds = array<i64: 1, 1, 2>, scalar_prefetch = 0 : i64, scratch_operands = 0 : i64, tpu.core_type = #tpu.core_type<tc>, window_params = [{transform_indices = @transform_0, window_bounds = array<i64: 2, 4, 8, 16>}, {transform_indices = @transform_1, window_bounds = array<i64: 2, 4, 1, 16>}, {transform_indices = @transform_2, window_bounds = array<i64: 2, 4, 1, 16>}, {transform_indices = @transform_3, window_bounds = array<i64: 2, 4, 8, 16>}]} {
    %c0 = arith.constant 0 : index
    %c0_0 = arith.constant 0 : index
    %c0_1 = arith.constant 0 : index
    %c0_2 = arith.constant 0 : index
    %0 = vector.load %arg3[%c0, %c0_0, %c0_1, %c0_2] : memref<2x4x8x16xf32, #tpu.memory_space<vmem>>, vector<2x4x8x16xf32>
    %1 = tpu.iota {dimensions = array<i32: 2>} : vector<1x1x8x16xi32>
    %c0_3 = arith.constant 0 : index
    %c0_4 = arith.constant 0 : index
    %c0_5 = arith.constant 0 : index
    %c0_6 = arith.constant 0 : index
    %2 = vector.load %arg4[%c0_3, %c0_4, %c0_5, %c0_6] : memref<2x4x1x16xf32, #tpu.memory_space<vmem>>, vector<2x4x1x16xf32>
    %c0_i32 = arith.constant 0 : i32
    %3 = vector.broadcast %c0_i32 : i32 to vector<1x1x8x16xi32>
    %4 = arith.cmpi eq, %1, %3 : vector<1x1x8x16xi32>
    %c0_i32_7 = arith.constant 0 : i32
    %5 = arith.cmpi eq, %arg2, %c0_i32_7 : i32
    %6 = vector.broadcast %5 : i1 to vector<1x1x8x16xi1>
    %7 = arith.andi %4, %6 : vector<1x1x8x16xi1>
    %8 = vector.shape_cast %7 : vector<1x1x8x16xi1> to vector<1x1x8x16xi1>
    %9 = vector.broadcast %8 : vector<1x1x8x16xi1> to vector<2x4x8x16xi1>
    %10 = vector.shape_cast %2 : vector<2x4x1x16xf32> to vector<2x4x1x16xf32>
    %11 = vector.broadcast %10 : vector<2x4x1x16xf32> to vector<2x4x8x16xf32>
    %12 = arith.select %9, %11, %0 : vector<2x4x8x16xi1>, vector<2x4x8x16xf32>
    %c0_8 = arith.constant 0 : index
    %c0_9 = arith.constant 0 : index
    %c0_10 = arith.constant 0 : index
    %c0_11 = arith.constant 0 : index
    %13 = vector.load %arg5[%c0_8, %c0_9, %c0_10, %c0_11] : memref<2x4x1x16xf32, #tpu.memory_space<vmem>>, vector<2x4x1x16xf32>
    %c7_i32 = arith.constant 7 : i32
    %14 = vector.broadcast %c7_i32 : i32 to vector<1x1x8x16xi32>
    %15 = arith.cmpi eq, %1, %14 : vector<1x1x8x16xi32>
    %c1_i32 = arith.constant 1 : i32
    %16 = arith.cmpi eq, %arg2, %c1_i32 : i32
    %17 = vector.broadcast %16 : i1 to vector<1x1x8x16xi1>
    %18 = arith.andi %15, %17 : vector<1x1x8x16xi1>
    %19 = vector.shape_cast %18 : vector<1x1x8x16xi1> to vector<1x1x8x16xi1>
    %20 = vector.broadcast %19 : vector<1x1x8x16xi1> to vector<2x4x8x16xi1>
    %21 = vector.shape_cast %13 : vector<2x4x1x16xf32> to vector<2x4x1x16xf32>
    %22 = vector.broadcast %21 : vector<2x4x1x16xf32> to vector<2x4x8x16xf32>
    %23 = arith.select %20, %22, %12 : vector<2x4x8x16xi1>, vector<2x4x8x16xf32>
    %c0_12 = arith.constant 0 : index
    %c0_13 = arith.constant 0 : index
    %c0_14 = arith.constant 0 : index
    %c0_15 = arith.constant 0 : index
    %24 = vector.load %arg6[%c0_12, %c0_13, %c0_14, %c0_15] : memref<2x4x8x16xf32, #tpu.memory_space<vmem>>, vector<2x4x8x16xf32>
    tpu.vector_store %arg6[%c0_12, %c0_13, %c0_14, %c0_15], %23 {strides = array<i32>} : memref<2x4x8x16xf32, #tpu.memory_space<vmem>>, vector<2x4x8x16xf32>,
    return
  }
  func.func @transform_0(%arg0: i32, %arg1: i32, %arg2: i32) -> (i32, i32, i32, i32) {
    %c1_i32 = arith.constant 1 : i32
    %0 = arith.muli %arg2, %c1_i32 : i32
    %c0_i32 = arith.constant 0 : i32
    %1 = arith.addi %c0_i32, %0 : i32
    %c0_i32_0 = arith.constant 0 : i32
    %c0_i32_1 = arith.constant 0 : i32
    return %arg0, %arg1, %1, %c0_i32_0 : i32, i32, i32, i32
  }
  func.func @transform_1(%arg0: i32, %arg1: i32, %arg2: i32) -> (i32, i32, i32, i32) {
    %c0_i32 = arith.constant 0 : i32
    %c0_i32_0 = arith.constant 0 : i32
    %c0_i32_1 = arith.constant 0 : i32
    return %arg0, %arg1, %c0_i32, %c0_i32_0 : i32, i32, i32, i32
  }
  func.func @transform_2(%arg0: i32, %arg1: i32, %arg2: i32) -> (i32, i32, i32, i32) {
    %c0_i32 = arith.constant 0 : i32
    %c0_i32_0 = arith.constant 0 : i32
    %c0_i32_1 = arith.constant 0 : i32
    return %arg0, %arg1, %c0_i32, %c0_i32_0 : i32, i32, i32, i32
  }
  func.func @transform_3(%arg0: i32, %arg1: i32, %arg2: i32) -> (i32, i32, i32, i32) {
    %c1_i32 = arith.constant 1 : i32
    %0 = arith.muli %arg2, %c1_i32 : i32
    %c0_i32 = arith.constant 0 : i32
    %1 = arith.addi %c0_i32, %0 : i32
    %c0_i32_0 = arith.constant 0 : i32
    %c0_i32_1 = arith.constant 0 : i32
    return %arg0, %arg1, %1, %c0_i32_0 : i32, i32, i32, i32
  }
}

</mosaic_0001>

<llo_original>
// kernel: tpu_custom_call.1
$region0: #{tpu_custom_call.1}
  #allocation0 [shape = 'u32[]', space=smem, size = 0x4, offset = 0x4, fixed_abs, tag = 'smem constant byte address 0x4 - core index']
  #allocation1 [shape = 'u32[72,128]{1,0:T(1,128)}', space=vmem, size = 0x9000, scoped, tag = 'internal scratch']
  %s0 = inlined_call_operand.hbm [shape: f32[2,4,16,16], index: 0, kind: input, shape index: {}, may-alias: {0,3}]
  %s1 = inlined_call_operand.vmem [shape: f32[2,4,1,16], index: 1, kind: input, shape index: {}]
  %s2 = inlined_call_operand.vmem [shape: f32[2,4,1,16], index: 2, kind: input, shape index: {}]
  %s3 = inlined_call_operand.hbm [shape: f32[2,4,16,16], index: 3, kind: output, shape index: {}, may-alias: {0,3}]
  %s4 = sld [smem:[#allocation0]]
  $region49: #{tpu_custom_call.1} parent=0
    _
  %s6 = ssub.s32 1, %s4
  %s7 = scalar_select 0, %s6, %s4
  $region1: #{tpu_custom_call.1} parent=0
    #allocation2 [shape = 'u8[65536]{0}', space=vmem, size = 0x10000, scoped, tag = 'input window, operand 0']
    #allocation3 [shape = 's32[2]{0}', space=sflag, size = 0x8, scoped, tag = 'scoped memory for tpu_custom_call.1']
    #allocation4 [shape = 's32[2]{0}', space=sflag, size = 0x8, scoped, tag = 'scoped memory for tpu_custom_call.1']
    #allocation5 [shape = 'u8[65536]{0}', space=vmem, size = 0x10000, scoped, tag = 'output window, operand 0']
    %8 = vsyncpa [#allocation3], 0
    %s9 = scalar_lea.sflag [#allocation3], 1
    %10 = vsyncpa %s9, 0
    %11 = vsyncpa [#allocation4], 0
    %s12 = scalar_lea.sflag [#allocation4], 1
    %13 = vsyncpa %s12, 0
    loop: start=0, step=1, limit=4
    $region2: #{tpu_custom_call.1} parent=1 // loop_pre_header
      _
    $region3: #{tpu_custom_call.1} parent=1 // loop_header
      %s15 = sphi 0, %s19
      %p16 = scmp.ge.s32.totalorder %s15, 4
      %s22 = sphi 0, %s41
      %s23 = sphi 0, %s37
      %s24 = sphi 0, %s33
      %s25 = sphi 0, %s22
      %s26 = sphi 0, %s23
      %s27 = sphi 0, %s24
      %s28 = sphi 0, %s25
      %s29 = sphi 0, %s26
      %s30 = sphi 0, %s27
      %s48 = sphi 0, %s50
      %s51 = sphi 0, %s48
      %s52 = sphi 0, %s51
      %s68 = sphi 0, %s52
      %s76 = sphi 0, %s78
      %s79 = sphi 0, %s76
      %s80 = sphi 0, %s79
      %s96 = sphi 0, %s80
      %s104 = sphi 0, %s106
      %s107 = sphi 0, %s104
      %s108 = sphi 0, %s107
      %s124 = sphi 0, %s108
      %s134 = sphi 0, %s136
      %s137 = sphi 0, %s134
      %s138 = sphi 0, %s137
      %s154 = sphi 0, %s138
    $region4: #{tpu_custom_call.1} parent=1 // loop_header_branch
      %18 = sbr.rel (%p16) target = $region8
    $region5: #{tpu_custom_call.1} parent=1 // loop_body
      %s20 = ssub.s32 %s15, 1
      %s21 = ssub.s32 %s15, 2
      %s31 = sadd.s32 1, %s24
      %p32 = scmp.ge.s32.totalorder %s31, 2
      %s33 = scalar_select %p32, 0, %s31
      %s34 = sadd.s32 1, %s23
      %s35 = scalar_select %p32, %s34, %s23
      %p36 = scmp.ge.s32.totalorder %s35, 1
      %s37 = scalar_select %p36, 0, %s35
      %s38 = sadd.s32 1, %s22
      %s39 = scalar_select %p36, %s38, %s22
      %p40 = scmp.ge.s32.totalorder %s39, 1
      %s41 = scalar_select %p40, 0, %s39
      %s42 = ssub.s32 %s22, %s41
      %s43 = ssub.s32 %s23, %s37
      %s44 = sor.u32 %s42, %s43
      %s45 = ssub.s32 %s24, %s33
      %s46 = sor.u32 %s44, %s45
      %p47 = scmp.eq.s32.totalorder %s46, 0
      %s49 = sadd.s32 %s48, 1
      %s50 = scalar_select %p47, %s48, %s49
      %p53 = pneg %p47
      %p54 = scmp.eq.s32.totalorder %s15, 1
      %p55 = por %p53, %p54
      %p56 = scmp.ne.s32.totalorder %s48, %s51
      %p57 = scmp.eq.s32.totalorder %s15, 0
      %p58 = por %p56, %p57
      %p59 = scmp.ne.s32.totalorder %s48, %s51
      %p60 = scmp.eq.s32.totalorder %s20, 1
      %p61 = por %p59, %p60
      %p62 = scmp.ne.s32.totalorder %s51, %s52
      %p63 = scmp.eq.s32.totalorder %s20, 0
      %p64 = por %p62, %p63
      %p65 = scmp.ne.s32.totalorder %s51, %s52
      %p66 = scmp.eq.s32.totalorder %s21, 1
      %p67 = por %p65, %p66
      %p69 = scmp.ne.s32.totalorder %s52, %s68
      %p70 = scmp.eq.s32.totalorder %s21, 0
      %p71 = por %p69, %p70
      %s72 = ssub.s32 %s22, %s41
      %s73 = ssub.s32 %s23, %s37
      %s74 = sor.u32 %s72, %s73
      %p75 = scmp.eq.s32.totalorder %s74, 0
      %s77 = sadd.s32 %s76, 1
      %s78 = scalar_select %p75, %s76, %s77
      %p81 = pneg %p75
      %p82 = scmp.eq.s32.totalorder %s15, 1
      %p83 = por %p81, %p82
      %p84 = scmp.ne.s32.totalorder %s76, %s79
      %p85 = scmp.eq.s32.totalorder %s15, 0
      %p86 = por %p84, %p85
      %p87 = scmp.ne.s32.totalorder %s76, %s79
      %p88 = scmp.eq.s32.totalorder %s20, 1
      %p89 = por %p87, %p88
      %p90 = scmp.ne.s32.totalorder %s79, %s80
      %p91 = scmp.eq.s32.totalorder %s20, 0
      %p92 = por %p90, %p91
      %p93 = scmp.ne.s32.totalorder %s79, %s80
      %p94 = scmp.eq.s32.totalorder %s21, 1
      %p95 = por %p93, %p94
      %p97 = scmp.ne.s32.totalorder %s80, %s96
      %p98 = scmp.eq.s32.totalorder %s21, 0
      %p99 = por %p97, %p98
      %s100 = ssub.s32 %s22, %s41
      %s101 = ssub.s32 %s23, %s37
      %s102 = sor.u32 %s100, %s101
      %p103 = scmp.eq.s32.totalorder %s102, 0
      %s105 = sadd.s32 %s104, 1
      %s106 = scalar_select %p103, %s104, %s105
      %p109 = pneg %p103
      %p110 = scmp.eq.s32.totalorder %s15, 1
      %p111 = por %p109, %p110
      %p112 = scmp.ne.s32.totalorder %s104, %s107
      %p113 = scmp.eq.s32.totalorder %s15, 0
      %p114 = por %p112, %p113
      %p115 = scmp.ne.s32.totalorder %s104, %s107
      %p116 = scmp.eq.s32.totalorder %s20, 1
      %p117 = por %p115, %p116
      %p118 = scmp.ne.s32.totalorder %s107, %s108
      %p119 = scmp.eq.s32.totalorder %s20, 0
      %p120 = por %p118, %p119
      %p121 = scmp.ne.s32.totalorder %s107, %s108
      %p122 = scmp.eq.s32.totalorder %s21, 1
      %p123 = por %p121, %p122
      %p125 = scmp.ne.s32.totalorder %s108, %s124
      %p126 = scmp.eq.s32.totalorder %s21, 0
      %p127 = por %p125, %p126
      %s128 = ssub.s32 %s22, %s41
      %s129 = ssub.s32 %s23, %s37
      %s130 = sor.u32 %s128, %s129
      %s131 = ssub.s32 %s24, %s33
      %s132 = sor.u32 %s130, %s131
      %p133 = scmp.eq.s32.totalorder %s132, 0
      %s135 = sadd.s32 %s134, 1
      %s136 = scalar_select %p133, %s134, %s135
      %p139 = pneg %p133
      %p140 = scmp.eq.s32.totalorder %s15, 1
      %p141 = por %p139, %p140
      %p142 = scmp.ne.s32.totalorder %s134, %s137
      %p143 = scmp.eq.s32.totalorder %s15, 0
      %p144 = por %p142, %p143
      %p145 = scmp.ne.s32.totalorder %s134, %s137
      %p146 = scmp.eq.s32.totalorder %s20, 1
      %p147 = por %p145, %p146
      %p148 = scmp.ne.s32.totalorder %s137, %s138
      %p149 = scmp.eq.s32.totalorder %s20, 0
      %p150 = por %p148, %p149
      %p151 = scmp.ne.s32.totalorder %s137, %s138
      %p152 = scmp.eq.s32.totalorder %s21, 1
      %p153 = por %p151, %p152
      %p155 = scmp.ne.s32.totalorder %s138, %s154
      %p156 = scmp.eq.s32.totalorder %s21, 0
      %p157 = por %p155, %p156
      %p158 = scmp.le.s32.totalorder 1, %s15
      %p159 = scmp.lt.s32.totalorder %s15, 3
      %p160 = pnand %p158, %p159
      %p161 = pneg %p160
      // Predicated region
      $region9: #{tpu_custom_call.1} parent=5 // pred_check
        _
      $region10: #{tpu_custom_call.1} parent=5 // pred_check_branch
        %163 = sbr.rel (%p160) target = $region12
      $region11: #{tpu_custom_call.1} parent=5 // pred_region
        %s164 = ssub.s32 %s15, 1
        // Predicated region
        $region13: #{tpu_custom_call.1} parent=11 // pred_check
          %p165 = pneg %p92
        $region14: #{tpu_custom_call.1} parent=11 // pred_check_branch
          %167 = sbr.rel (%p165) target = $region16
        $region15: #{tpu_custom_call.1} parent=11 // pred_region
          %s168 = smul.u32 2, %s25
          %s169 = smul.u32 4, %s26
          %p170 = scmp.lt.s32.totalorder %s168, 1
          %s171 = scalar_select %p170, %s168, 1
          %p172 = scmp.lt.s32.totalorder %s169, 3
          %s173 = scalar_select %p172, %s169, 3
          %s174 = smul.addr %s171, 4
          %s175 = sadd.s32 %s173, %s174
          %s176 = scalar_lea.vmem %s1, %s175
          %s177 = smul.u32 2, %s25
          %s178 = smul.u32 4, %s26
        $region16: #{tpu_custom_call.1} parent=11 // pred_fallthru
          _
        // Predicated region
        $region17: #{tpu_custom_call.1} parent=11 // pred_check
          %p179 = pneg %p120
        $region18: #{tpu_custom_call.1} parent=11 // pred_check_branch
          %181 = sbr.rel (%p179) target = $region20
        $region19: #{tpu_custom_call.1} parent=11 // pred_region
          %s182 = smul.u32 2, %s25
          %s183 = smul.u32 4, %s26
          %p184 = scmp.lt.s32.totalorder %s182, 1
          %s185 = scalar_select %p184, %s182, 1
          %p186 = scmp.lt.s32.totalorder %s183, 3
          %s187 = scalar_select %p186, %s183, 3
          %s188 = smul.addr %s185, 4
          %s189 = sadd.s32 %s187, %s188
          %s190 = scalar_lea.vmem %s2, %s189
          %s191 = smul.u32 2, %s25
          %s192 = smul.u32 4, %s26
        $region20: #{tpu_custom_call.1} parent=11 // pred_fallthru
          _
      $region12: #{tpu_custom_call.1} parent=5 // pred_fallthru
        _
      %p193 = scmp.lt.s32.totalorder %s15, 2
      // Predicated region
      $region21: #{tpu_custom_call.1} parent=5 // pred_check
        %p194 = pneg %p193
      $region22: #{tpu_custom_call.1} parent=5 // pred_check_branch
        %196 = sbr.rel (%p194) target = $region24
      $region23: #{tpu_custom_call.1} parent=5 // pred_region
        // Predicated region
        $region25: #{tpu_custom_call.1} parent=23 // pred_check
          %p197 = pneg %p58
        $region26: #{tpu_custom_call.1} parent=23 // pred_check_branch
          %199 = sbr.rel (%p197) target = $region28
        $region27: #{tpu_custom_call.1} parent=23 // pred_region
          %s200 = sand.u32 %s48, 1
          %s201 = scalar_lea.sflag [#allocation3], %s200
          %s202 = sand.u32 %s48, 1
          %s203 = smul.addr %s202, 64
          %s204 = scalar_lea.vmem [#allocation2], %s203
          %s205 = smul.u32 2, %s22
          %s206 = smul.u32 4, %s23
          %208 = vsyncadd %s201, 0
          %s209 = smul.addr %s206, 2
          %s210 = sadd.s32 %s24, %s209
          %s211 = smul.addr %s205, 8
          %s212 = sadd.s32 %s210, %s211
          %s213 = smul.addr %s212, 8
          %s214 = scalar_lea.hbm %s0, %s213
          %s215 = sshll.u32 %s214, 4
          %s216 = int_to_ptr.hbm [resolvable:$true] %s215
          %s217 = sshll.u32 %s204, 4
          %s218 = int_to_ptr.vmem [resolvable:$true] %s217
          %223 = dma.hbm_to_vmem [thread:$0]  %s216, 1024, %s218, %s201, 256, 128, 8
        $region28: #{tpu_custom_call.1} parent=23 // pred_fallthru
          _
      $region24: #{tpu_custom_call.1} parent=5 // pred_fallthru
        _
      %p224 = scmp.le.s32.totalorder 1, %s15
      %p225 = scmp.lt.s32.totalorder %s15, 3
      %p226 = pnand %p224, %p225
      %p227 = pneg %p226
      // Predicated region
      $region29: #{tpu_custom_call.1} parent=5 // pred_check
        _
      $region30: #{tpu_custom_call.1} parent=5 // pred_check_branch
        %229 = sbr.rel (%p226) target = $region32
      $region31: #{tpu_custom_call.1} parent=5 // pred_region
        %s230 = ssub.s32 %s15, 1
        %s231 = sand.u32 %s51, 1
        %s232 = scalar_lea.sflag [#allocation3], %s231
        %s233 = sand.u32 %s51, 1
        %s234 = smul.addr %s233, 64
        %s235 = scalar_lea.vmem [#allocation2], %s234
        // Predicated region
        $region33: #{tpu_custom_call.1} parent=31 // pred_check
          %p236 = pneg %p64
        $region34: #{tpu_custom_call.1} parent=31 // pred_check_branch
          %238 = sbr.rel (%p236) target = $region36
        $region35: #{tpu_custom_call.1} parent=31 // pred_region
          %240 = dma.done %s232, 1024
        $region36: #{tpu_custom_call.1} parent=31 // pred_fallthru
          _
        %s241 = sand.u32 %s51, 1
        %s242 = scalar_lea.sflag [#allocation3], %s241
        %s243 = sand.u32 %s51, 1
        %s244 = smul.addr %s243, 64
        %s245 = scalar_lea.vmem [#allocation2], %s244
        %p246 = pneg %p64
        %p247 = pneg %p61
        %s248 = smul.u32 2, %s25
        %s249 = smul.u32 4, %s26
        %p250 = scmp.lt.s32.totalorder %s248, 1
        %s251 = scalar_select %p250, %s248, 1
        %p252 = scmp.lt.s32.totalorder %s249, 3
        %s253 = scalar_select %p252, %s249, 3
        %s254 = smul.addr %s251, 4
        %s255 = sadd.s32 %s253, %s254
        %s256 = scalar_lea.vmem %s1, %s255
        %p257 = pneg %p92
        %p258 = pneg %p89
        %s259 = smul.u32 2, %s25
        %s260 = smul.u32 4, %s26
        %p261 = scmp.lt.s32.totalorder %s259, 1
        %s262 = scalar_select %p261, %s259, 1
        %p263 = scmp.lt.s32.totalorder %s260, 3
        %s264 = scalar_select %p263, %s260, 3
        %s265 = smul.addr %s262, 4
        %s266 = sadd.s32 %s264, %s265
        %s267 = scalar_lea.vmem %s2, %s266
        %p268 = pneg %p120
        %p269 = pneg %p117
        %p270 = pneg %p150
        %p271 = pneg %p147
        %s272 = sand.u32 %s137, 1
        %s273 = scalar_lea.sflag [#allocation4], %s272
        %s274 = sand.u32 %s137, 1
        %s275 = smul.addr %s274, 64
        %s276 = scalar_lea.vmem [#allocation5], %s275
        %s277 = smul.u32 2, %s25
        %s278 = smul.u32 4, %s26
        %s279 = smul.u32 2, %s25
        %s280 = smul.u32 4, %s26
        %p281 = scmp.lt.s32.totalorder %s279, 1
        %s282 = scalar_select %p281, %s279, 1
        %p283 = scmp.lt.s32.totalorder %s280, 3
        %s284 = scalar_select %p283, %s280, 3
        %s285 = smul.addr %s282, 4
        %s286 = sadd.s32 %s284, %s285
        %s287 = scalar_lea.vmem %s1, %s286
        %s288 = smul.u32 2, %s25
        %s289 = smul.u32 4, %s26
        %s290 = smul.u32 2, %s25
        %s291 = smul.u32 4, %s26
        %p292 = scmp.lt.s32.totalorder %s290, 1
        %s293 = scalar_select %p292, %s290, 1
        %p294 = scmp.lt.s32.totalorder %s291, 3
        %s295 = scalar_select %p294, %s291, 3
        %s296 = smul.addr %s293, 4
        %s297 = sadd.s32 %s295, %s296
        %s298 = scalar_lea.vmem %s2, %s297
        %s299 = smul.u32 2, %s25
        %s300 = smul.u32 4, %s26
        %s301 = smul.u32 2, %s25
        %s302 = smul.u32 4, %s26
        %v303 = vld [vmem:[%s235] sm:$0xff]
        %v304 = vld [vmem:[%s235 + $0x8] sm:$0xff]
        %v305 = vld [vmem:[%s235 + $0x10] sm:$0xff]
        %v306 = vld [vmem:[%s235 + $0x18] sm:$0xff]
        %v307 = vld [vmem:[%s235 + $0x20] sm:$0xff]
        %v308 = vld [vmem:[%s235 + $0x28] sm:$0xff]
        %v309 = vld [vmem:[%s235 + $0x30] sm:$0xff]
        %v310 = vld [vmem:[%s235 + $0x38] sm:$0xff]
        %v311 = vlaneseq
        %v312 = vshrl.u32 %v311, 7
        %v313 = vld [vmem:[%s287] sm:$0x1]
        %v314 = vld [vmem:[%s287 + $0x1] sm:$0x1]
        %v315 = vld [vmem:[%s287 + $0x2] sm:$0x1]
        %v316 = vld [vmem:[%s287 + $0x3] sm:$0x1]
        %v317 = vld [vmem:[%s287 + $0x4] sm:$0x1]
        %v318 = vld [vmem:[%s287 + $0x5] sm:$0x1]
        %v319 = vld [vmem:[%s287 + $0x6] sm:$0x1]
        %v320 = vld [vmem:[%s287 + $0x7] sm:$0x1]
        %vm321 = vcmp.eq.s32.totalorder %v312, 0
        %p322 = scmp.eq.s32.totalorder %s27, 0
        %s323 = scalar_select %p322, 1, 0
        %v324 = vstv %s323
        %vm325 = vcmp.eq.s32.totalorder %v324, 1
        %vm326 = vmand %vm321, %vm325
        %v327 = vsel %vm326, 1, 0
        %vm328 = vcmp.eq.s32.totalorder %v327, 1
        %v337 = vperm.slane %v313, 0
        %v338 = vperm.slane %v314, 0
        %v339 = vperm.slane %v315, 0
        %v340 = vperm.slane %v316, 0
        %v341 = vperm.slane %v317, 0
        %v342 = vperm.slane %v318, 0
        %v343 = vperm.slane %v319, 0
        %v344 = vperm.slane %v320, 0
        %v353 = vsel %vm328, %v337, %v303
        %v354 = vsel %vm328, %v338, %v304
        %v355 = vsel %vm328, %v339, %v305
        %v356 = vsel %vm328, %v340, %v306
        %v357 = vsel %vm328, %v341, %v307
        %v358 = vsel %vm328, %v342, %v308
        %v359 = vsel %vm328, %v343, %v309
        %v360 = vsel %vm328, %v344, %v310
        %v361 = vld [vmem:[%s298] sm:$0x1]
        %v362 = vld [vmem:[%s298 + $0x1] sm:$0x1]
        %v363 = vld [vmem:[%s298 + $0x2] sm:$0x1]
        %v364 = vld [vmem:[%s298 + $0x3] sm:$0x1]
        %v365 = vld [vmem:[%s298 + $0x4] sm:$0x1]
        %v366 = vld [vmem:[%s298 + $0x5] sm:$0x1]
        %v367 = vld [vmem:[%s298 + $0x6] sm:$0x1]
        %v368 = vld [vmem:[%s298 + $0x7] sm:$0x1]
        %vm369 = vcmp.eq.s32.totalorder %v312, 7
        %p370 = scmp.eq.s32.totalorder %s27, 1
        %s371 = scalar_select %p370, 1, 0
        %v372 = vstv %s371
        %vm373 = vcmp.eq.s32.totalorder %v372, 1
        %vm374 = vmand %vm369, %vm373
        %v375 = vsel %vm374, 1, 0
        %vm376 = vcmp.eq.s32.totalorder %v375, 1
        %v385 = vperm.slane %v361, 0
        %v386 = vperm.slane %v362, 0
        %v387 = vperm.slane %v363, 0
        %v388 = vperm.slane %v364, 0
        %v389 = vperm.slane %v365, 0
        %v390 = vperm.slane %v366, 0
        %v391 = vperm.slane %v367, 0
        %v392 = vperm.slane %v368, 0
        %v401 = vsel %vm376, %v385, %v353
        %v402 = vsel %vm376, %v386, %v354
        %v403 = vsel %vm376, %v387, %v355
        %v404 = vsel %vm376, %v388, %v356
        %v405 = vsel %vm376, %v389, %v357
        %v406 = vsel %vm376, %v390, %v358
        %v407 = vsel %vm376, %v391, %v359
        %v408 = vsel %vm376, %v392, %v360
        %vm409 = vcmask 130048
        %410 = vst.msk [vmem:[%s276] sm:$0xff] %vm409, %v401
        %411 = vst.msk [vmem:[%s276 + $0x8] sm:$0xff] %vm409, %v402
        %412 = vst.msk [vmem:[%s276 + $0x10] sm:$0xff] %vm409, %v403
        %413 = vst.msk [vmem:[%s276 + $0x18] sm:$0xff] %vm409, %v404
        %414 = vst.msk [vmem:[%s276 + $0x20] sm:$0xff] %vm409, %v405
        %415 = vst.msk [vmem:[%s276 + $0x28] sm:$0xff] %vm409, %v406
        %416 = vst.msk [vmem:[%s276 + $0x30] sm:$0xff] %vm409, %v407
        %417 = vst.msk [vmem:[%s276 + $0x38] sm:$0xff] %vm409, %v408
        %s418 = sand.u32 %s137, 1
        %s419 = scalar_lea.sflag [#allocation4], %s418
        %s420 = sand.u32 %s137, 1
        %s421 = smul.addr %s420, 64
        %s422 = scalar_lea.vmem [#allocation5], %s421
        // Predicated region
        $region37: #{tpu_custom_call.1} parent=31 // pred_check
          %p423 = pneg %p147
        $region38: #{tpu_custom_call.1} parent=31 // pred_check_branch
          %425 = sbr.rel (%p423) target = $region40
        $region39: #{tpu_custom_call.1} parent=31 // pred_region
          %s426 = smul.u32 2, %s25
          %s427 = smul.u32 4, %s26
          %429 = vsyncadd %s419, 0
          %s430 = smul.addr %s427, 2
          %s431 = sadd.s32 %s27, %s430
          %s432 = smul.addr %s426, 8
          %s433 = sadd.s32 %s431, %s432
          %s434 = smul.addr %s433, 8
          %s435 = scalar_lea.hbm %s3, %s434
          %s436 = sshll.u32 %s422, 4
          %s437 = int_to_ptr.vmem [resolvable:$true] %s436
          %s438 = sshll.u32 %s435, 4
          %s439 = int_to_ptr.hbm [resolvable:$true] %s438
          %444 = dma.vmem_to_hbm [thread:$0]  %s437, 1024, %s439, %s419, 128, 256, 8
        $region40: #{tpu_custom_call.1} parent=31 // pred_fallthru
          _
      $region32: #{tpu_custom_call.1} parent=5 // pred_fallthru
        _
      %p445 = scmp.le.s32.totalorder 2, %s15
      // Predicated region
      $region41: #{tpu_custom_call.1} parent=5 // pred_check
        %p446 = pneg %p445
      $region42: #{tpu_custom_call.1} parent=5 // pred_check_branch
        %448 = sbr.rel (%p446) target = $region44
      $region43: #{tpu_custom_call.1} parent=5 // pred_region
        %s449 = ssub.s32 %s15, 2
        // Predicated region
        $region45: #{tpu_custom_call.1} parent=43 // pred_check
          %p450 = pneg %p153
        $region46: #{tpu_custom_call.1} parent=43 // pred_check_branch
          %452 = sbr.rel (%p450) target = $region48
        $region47: #{tpu_custom_call.1} parent=43 // pred_region
          %s453 = sand.u32 %s138, 1
          %s454 = scalar_lea.sflag [#allocation4], %s453
          %s455 = sand.u32 %s138, 1
          %s456 = smul.addr %s455, 64
          %s457 = scalar_lea.vmem [#allocation5], %s456
          %459 = dma.done %s454, 1024
        $region48: #{tpu_custom_call.1} parent=43 // pred_fallthru
          _
      $region44: #{tpu_custom_call.1} parent=5 // pred_fallthru
        _
    $region6: #{tpu_custom_call.1} parent=1 // loop_footer
      %s19 = sadd.s32 1, %s15
    $region7: #{tpu_custom_call.1} parent=1 // loop_footer_branch
      %14 = sbr.rel target = $region3
    $region8: #{tpu_custom_call.1} parent=1 // loop_exit
      _
    %460 = vsyncpa [#allocation3], 1
    %s461 = scalar_lea.sflag [#allocation3], 1
    %462 = vsyncpa %s461, 1
    %463 = vsyncpa [#allocation4], 1
    %s464 = scalar_lea.sflag [#allocation4], 1
    %465 = vsyncpa %s464, 1

</llo_original>
